<compile_context>
chip_gen: v7x
topology: tpu7x:2x2x1
jax: 0.10.0
libtpu: 0.0.40
codegen_flags: <defaults>
</compile_context>

<pallas_src>
import functools
import math

import numpy as np
import jax
import jax.numpy as jnp
from jax import lax
from jax.experimental import pallas as pl
from jax.experimental.pallas import tpu as pltpu


# -----------------------------------------------------------------------------
# Stage 1: fused Q/K/V projection (hoisted out of the attention grid).
# -----------------------------------------------------------------------------
def qkv_proj_kernel(x_ref, wq_ref, bq_ref, wk_ref, bk_ref, wv_ref, bv_ref,
                    q_ref, k_ref, v_ref, *, scale):
    x = x_ref[...]                                                 # (tm, D) bf16
    q = jnp.dot(x, wq_ref[...], preferred_element_type=jnp.float32) + bq_ref[...]
    q_ref[...] = (q * scale).astype(q_ref.dtype)                   # fold 1/sqrt(d_k)
    k = jnp.dot(x, wk_ref[...], preferred_element_type=jnp.float32) + bk_ref[...]
    k_ref[...] = k.astype(k_ref.dtype)
    v = jnp.dot(x, wv_ref[...], preferred_element_type=jnp.float32) + bv_ref[...]
    v_ref[...] = v.astype(v_ref.dtype)


# -----------------------------------------------------------------------------
# Stage 2: flash attention (online softmax) + fused head-concat / Wo projection.
# -----------------------------------------------------------------------------
def flash_attn_kernel(q_ref, k_ref, v_ref, wo_ref, bo_ref, o_ref,
                      m_scr, l_scr, acc_scr, *, h, d_k):
    ki = pl.program_id(2)

    @pl.when(ki == 0)
    def _init():
        m_scr[...] = jnp.full(m_scr.shape, -jnp.inf, dtype=m_scr.dtype)
        l_scr[...] = jnp.zeros(l_scr.shape, dtype=l_scr.dtype)
        acc_scr[...] = jnp.zeros(acc_scr.shape, dtype=acc_scr.dtype)

    q = q_ref[0]                                                   # (tq, D) bf16, pre-scaled
    k = k_ref[0]                                                   # (tk, D) bf16
    v = v_ref[0]                                                   # (tk, D) bf16

    # Static per-head loop: each head is a pair of MXU matmuls fed directly from
    # static lane slices of the projection tiles (no head-major repack / scratch).
    for head in range(h):
        sl = slice(head * d_k, (head + 1) * d_k)
        s = lax.dot_general(q[:, sl], k[:, sl], (((1,), (1,)), ((), ())),
                            preferred_element_type=jnp.float32)    # (tq, tk) f32
        m_prev = m_scr[head]                                       # (tq, 1)
        m_new = jnp.maximum(m_prev, jnp.max(s, axis=-1, keepdims=True))
        alpha = jnp.exp(m_prev - m_new)
        # TODO(synk): nn.Dropout(p=0.1) on p is omitted (eval-mode identity).
        # TODO(synk): on v6e/v7x the EUP supports bf16 exp; computing
        #   p = jnp.exp((s - m_new).astype(jnp.bfloat16)) roughly doubles exp
        #   throughput there.  Kept f32 for v5e compatibility.
        p = jnp.exp(s - m_new)                                     # (tq, tk) f32
        l_scr[head] = alpha * l_scr[head] + jnp.sum(p, axis=-1, keepdims=True)
        acc_scr[:, sl] = alpha * acc_scr[:, sl] + jnp.dot(
            p.astype(v.dtype), v[:, sl], preferred_element_type=jnp.float32)
        m_scr[head] = m_new

    @pl.when(ki == pl.num_programs(2) - 1)
    def _finalize():
        # Per-head 1/l through the EUP, then ONE lane-dense (tq, D) x (D, D) Wo matmul
        # (head-concat is implicit in the acc slab layout; K = D keeps the MXU full).
        for head in range(h):
            sl = slice(head * d_k, (head + 1) * d_k)
            acc_scr[:, sl] = acc_scr[:, sl] * pl.reciprocal(l_scr[head], approx=True)
        ctx = acc_scr[...].astype(wo_ref.dtype)                    # (tq, D) bf16
        out = jnp.dot(ctx, wo_ref[...], preferred_element_type=jnp.float32)
        o_ref[0] = (out + bo_ref[...]).astype(o_ref.dtype)


# -----------------------------------------------------------------------------
# Wrappers
# -----------------------------------------------------------------------------
def _round_up(v, m):
    return (v + m - 1) // m * m


def _vmem_bytes(shape, dtype):
    """Approximate VMEM footprint of one buffer with (8, 128) padding."""
    shape = list(shape)
    if len(shape) >= 1:
        shape[-1] = _round_up(shape[-1], 128)
    if len(shape) >= 2:
        shape[-2] = _round_up(shape[-2], 8)
    n = 1
    for s in shape:
        n *= s
    return n * jnp.dtype(dtype).itemsize


def _vmem_limit(raw_bytes):
    return min(int(raw_bytes * 1.5) + (2 << 20), 128 * 1024 * 1024)


def _mha_impl(x, params, *, h, block_q, block_k, block_rows, compute_dtype,
              single_buffer_weights):
    B, S, D = x.shape
    assert D % h == 0
    d_k = D // h
    scale = 1.0 / math.sqrt(d_k)

    tq = min(block_q, S)
    tk = min(block_k, S)
    assert S % tq == 0 and S % tk == 0, "seq len must be divisible by the tile sizes"
    nq, nk = S // tq, S // tk

    rows = B * S
    tm = min(block_rows, rows)
    n_row_tiles = pl.cdiv(rows, tm)

    # bf16 matmul operands (f32 accumulation in-kernel); biases stay f32.
    wq = params["wq"].astype(compute_dtype)
    wk = params["wk"].astype(compute_dtype)
    wv = params["wv"].astype(compute_dtype)
    wo = params["wo"].astype(compute_dtype)
    bq = params["bq"].astype(jnp.float32)
    bk = params["bk"].astype(jnp.float32)
    bv = params["bv"].astype(jnp.float32)
    bo = params["bo"].astype(jnp.float32)
    x2d = x.reshape(rows, D).astype(compute_dtype)

    if single_buffer_weights:
        # Grid-invariant weights/biases: single VMEM buffer instead of the default
        # double-buffering (halves weight VMEM -- critical on v7x's 64 MiB / TC).
        weight_mode = dict(pipeline_mode=pl.Buffered(1))
        weight_bufs = 1
    else:
        weight_mode = {}
        weight_bufs = 2

    itemsize_c = jnp.dtype(compute_dtype).itemsize

    # ---------------- Stage 1: Q/K/V projections (computed exactly once) ----------------
    proj_cost = pl.CostEstimate(
        flops=3 * 2 * rows * D * D,
        transcendentals=0,
        bytes_accessed=(rows * D * itemsize_c          # x read once
                        + 3 * D * D * itemsize_c       # Wq/Wk/Wv
                        + 3 * D * 4                    # biases (f32)
                        + 3 * rows * D * itemsize_c))  # q/k/v written once

    proj_vmem = (2 * _vmem_bytes((tm, D), compute_dtype)                  # x tiles
                 + 3 * weight_bufs * _vmem_bytes((D, D), compute_dtype)   # weights
                 + 3 * 2 * _vmem_bytes((1, D), jnp.float32)               # biases
                 + 3 * 2 * _vmem_bytes((tm, D), compute_dtype))           # q/k/v tiles

    q2d, k2d, v2d = pl.pallas_call(
        functools.partial(qkv_proj_kernel, scale=scale),
        out_shape=(jax.ShapeDtypeStruct((rows, D), compute_dtype),) * 3,
        grid_spec=pltpu.PrefetchScalarGridSpec(
            num_scalar_prefetch=0,
            grid=(n_row_tiles,),
            in_specs=[
                pl.BlockSpec((tm, D), lambda i: (i, 0)),                      # x rows
                pl.BlockSpec((D, D), lambda i: (0, 0), **weight_mode),        # Wq
                pl.BlockSpec((1, D), lambda i: (0, 0), **weight_mode),        # bq
                pl.BlockSpec((D, D), lambda i: (0, 0), **weight_mode),        # Wk
                pl.BlockSpec((1, D), lambda i: (0, 0), **weight_mode),        # bk
                pl.BlockSpec((D, D), lambda i: (0, 0), **weight_mode),        # Wv
                pl.BlockSpec((1, D), lambda i: (0, 0), **weight_mode),        # bv
            ],
            out_specs=[pl.BlockSpec((tm, D), lambda i: (i, 0))] * 3,
        ),
        compiler_params=pltpu.CompilerParams(
            dimension_semantics=("parallel",),
            vmem_limit_bytes=_vmem_limit(proj_vmem)),
        cost_estimate=proj_cost,
    )(x2d, wq, bq, wk, bk, wv, bv)

    q3 = q2d.reshape(B, S, D)
    k3 = k2d.reshape(B, S, D)
    v3 = v2d.reshape(B, S, D)

    # ---------------- Stage 2: flash attention + fused Wo projection ----------------
    attn_cost = pl.CostEstimate(
        flops=4 * B * S * S * D + 2 * B * S * D * D,
        transcendentals=B * h * S * S,
        bytes_accessed=(B * S * D * itemsize_c                  # Q read once
                        + 2 * nq * B * S * D * itemsize_c       # K, V re-read per q tile
                        + D * D * itemsize_c + D * 4            # Wo, bo
                        + B * S * D * x.dtype.itemsize))        # output write

    attn_vmem = (2 * _vmem_bytes((1, tq, D), compute_dtype)               # q tiles
                 + 2 * 2 * _vmem_bytes((1, tk, D), compute_dtype)         # k, v tiles
                 + weight_bufs * _vmem_bytes((D, D), compute_dtype)       # Wo
                 + 2 * _vmem_bytes((1, D), jnp.float32)                   # bo
                 + 2 * _vmem_bytes((1, tq, D), x.dtype)                   # output tiles
                 + 2 * h * _vmem_bytes((tq, 1), jnp.float32)              # m, l scratch
                 + _vmem_bytes((tq, D), jnp.float32))                     # acc slab

    out = pl.pallas_call(
        functools.partial(flash_attn_kernel, h=h, d_k=d_k),
        out_shape=jax.ShapeDtypeStruct((B, S, D), x.dtype),
        grid_spec=pltpu.PrefetchScalarGridSpec(
            num_scalar_prefetch=0,
            grid=(B, nq, nk),
            in_specs=[
                pl.BlockSpec((1, tq, D), lambda b, qi, ki: (b, qi, 0)),        # Q
                pl.BlockSpec((1, tk, D), lambda b, qi, ki: (b, ki, 0)),        # K
                pl.BlockSpec((1, tk, D), lambda b, qi, ki: (b, ki, 0)),        # V
                pl.BlockSpec((D, D), lambda b, qi, ki: (0, 0), **weight_mode),  # Wo
                pl.BlockSpec((1, D), lambda b, qi, ki: (0, 0), **weight_mode),  # bo
            ],
            out_specs=pl.BlockSpec((1, tq, D), lambda b, qi, ki: (b, qi, 0)),
            scratch_shapes=[
                pltpu.VMEM((h, tq, 1), jnp.float32),   # running max  m (per head)
                pltpu.VMEM((h, tq, 1), jnp.float32),   # running sum  l (per head)
                pltpu.VMEM((tq, D), jnp.float32),      # lane-dense f32 accumulator slab
            ],
        ),
        compiler_params=pltpu.CompilerParams(
            dimension_semantics=("parallel", "parallel", "arbitrary"),
            vmem_limit_bytes=_vmem_limit(attn_vmem)),
        cost_estimate=attn_cost,
    )(q3, k3, v3, wo, bo)
    return out


def multi_head_attention(x, params, *, h, block_q=128, block_k=128, block_rows=256,
                         compute_dtype=jnp.bfloat16, single_buffer_weights=True):
    """Forward pass of MultiHeadAttention (mask=None, eval mode). x: (B, S, D)."""
    # TODO(synk): on v6e/v7x prefer block_q=block_k=256 (2x256^2 MXU) when S and the
    #   VMEM budget allow; keep 128 on v5e (4x128^2 MXU, 16 MiB scoped-VMEM default).
    # TODO(synk): the fully-resident bf16 weight design needs ~4*D^2*2 B <= ~48 MiB per
    #   TensorCore on v7x (64 MiB / TC), i.e. D <= ~2048; above that stream the
    #   projection weights over their D_in axis instead of keeping them resident.
    kwargs = dict(h=h, block_q=block_q, block_k=block_k, block_rows=block_rows,
                  compute_dtype=compute_dtype)
    if single_buffer_weights:
        try:
            return _mha_impl(x, params, single_buffer_weights=True, **kwargs)
        except Exception:
            # Fallback for JAX builds where pipeline_mode=pl.Buffered(1) is not
            # supported on pallas_call BlockSpecs: default double-buffered weights.
            pass
    return _mha_impl(x, params, single_buffer_weights=False, **kwargs)


def reference_mha(x, params, *, h):
    """Pure-JAX f32 reference matching the PyTorch module semantics (eval mode)."""
    B, S, D = x.shape
    d_k = D // h
    q = x @ params["wq"] + params["bq"][0]
    k = x @ params["wk"] + params["bk"][0]
    v = x @ params["wv"] + params["bv"][0]
    q = q.reshape(B, S, h, d_k).transpose(0, 2, 1, 3)
    k = k.reshape(B, S, h, d_k).transpose(0, 2, 1, 3)
    v = v.reshape(B, S, h, d_k).transpose(0, 2, 1, 3)
    scores = jnp.einsum("bhqd,bhkd->bhqk", q, k) / math.sqrt(d_k)
    p = jax.nn.softmax(scores, axis=-1)
    ctx = jnp.einsum("bhqk,bhkd->bhqd", p, v)
    ctx = ctx.transpose(0, 2, 1, 3).reshape(B, S, D)
    return ctx @ params["wo"] + params["bo"][0]


if __name__ == "__main__":
    B, S, D, H = 2, 8, 32, 4   # batch, seq, d_model, heads  (d_k = 8)

    key = jax.random.PRNGKey(0)
    keys = jax.random.split(key, 9)
    bound = 1.0 / math.sqrt(D)  # ~ torch.nn.Linear default init scale

    params = {
        "wq": jax.random.uniform(keys[0], (D, D), jnp.float32, -bound, bound),
        "bq": jax.random.uniform(keys[1], (1, D), jnp.float32, -bound, bound),
        "wk": jax.random.uniform(keys[2], (D, D), jnp.float32, -bound, bound),
        "bk": jax.random.uniform(keys[3], (1, D), jnp.float32, -bound, bound),
        "wv": jax.random.uniform(keys[4], (D, D), jnp.float32, -bound, bound),
        "bv": jax.random.uniform(keys[5], (1, D), jnp.float32, -bound, bound),
        "wo": jax.random.uniform(keys[6], (D, D), jnp.float32, -bound, bound),
        "bo": jax.random.uniform(keys[7], (1, D), jnp.float32, -bound, bound),
    }
    x = jax.random.normal(keys[8], (B, S, D), jnp.float32)

    out = multi_head_attention(x, params, h=H)
    out = jax.block_until_ready(out)

    ref = reference_mha(x, params, h=H)
    # bf16 matmul operands (f32 accumulation) + approx reciprocal -> loosened tolerance.
    np.testing.assert_allclose(np.asarray(out), np.asarray(ref),
                               rtol=2e-2, atol=2e-2)

    print("KERNEL_OK")
</pallas_src>

<mosaic_0001>
module attributes {stable_mosaic.version = 11 : i64} {
  func.func @qkv_proj_kernel(%arg0: i32, %arg1: memref<16x32xbf16, #tpu.memory_space<vmem>>, %arg2: memref<32x32xbf16, #tpu.memory_space<vmem>>, %arg3: memref<1x32xf32, #tpu.memory_space<vmem>>, %arg4: memref<32x32xbf16, #tpu.memory_space<vmem>>, %arg5: memref<1x32xf32, #tpu.memory_space<vmem>>, %arg6: memref<32x32xbf16, #tpu.memory_space<vmem>>, %arg7: memref<1x32xf32, #tpu.memory_space<vmem>>, %arg8: memref<16x32xbf16, #tpu.memory_space<vmem>>, %arg9: memref<16x32xbf16, #tpu.memory_space<vmem>>, %arg10: memref<16x32xbf16, #tpu.memory_space<vmem>>) attributes {dimension_semantics = [#tpu.dimension_semantics<parallel>], iteration_bounds = array<i64: 1>, scalar_prefetch = 0 : i64, scratch_operands = 0 : i64, tpu.core_type = #tpu.core_type<tc>, window_params = [{transform_indices = @transform_0, window_bounds = array<i64: 16, 32>}, {pipeline_mode = #tpu.pipeline_mode<synchronous>, transform_indices = @transform_1, window_bounds = array<i64: 32, 32>}, {pipeline_mode = #tpu.pipeline_mode<synchronous>, transform_indices = @transform_2, window_bounds = array<i64: 1, 32>}, {pipeline_mode = #tpu.pipeline_mode<synchronous>, transform_indices = @transform_3, window_bounds = array<i64: 32, 32>}, {pipeline_mode = #tpu.pipeline_mode<synchronous>, transform_indices = @transform_4, window_bounds = array<i64: 1, 32>}, {pipeline_mode = #tpu.pipeline_mode<synchronous>, transform_indices = @transform_5, window_bounds = array<i64: 32, 32>}, {pipeline_mode = #tpu.pipeline_mode<synchronous>, transform_indices = @transform_6, window_bounds = array<i64: 1, 32>}, {transform_indices = @transform_7, window_bounds = array<i64: 16, 32>}, {transform_indices = @transform_8, window_bounds = array<i64: 16, 32>}, {transform_indices = @transform_9, window_bounds = array<i64: 16, 32>}]} {
    %c0 = arith.constant 0 : index
    %c0_0 = arith.constant 0 : index
    %0 = vector.load %arg1[%c0, %c0_0] : memref<16x32xbf16, #tpu.memory_space<vmem>>, vector<16x32xbf16>
    %c0_1 = arith.constant 0 : index
    %c0_2 = arith.constant 0 : index
    %1 = vector.load %arg2[%c0_1, %c0_2] : memref<32x32xbf16, #tpu.memory_space<vmem>>, vector<32x32xbf16>
    %cst = arith.constant dense<0.000000e+00> : vector<16x32xf32>
    %2 = tpu.matmul %0, %1, %cst {dimension_numbers = #tpu.dot_dimension_numbers<[1], [0], [0], [1], [0, 0, 1, 1], [], []>} : vector<16x32xbf16>, vector<32x32xbf16>, vector<16x32xf32> -> vector<16x32xf32>
    %c0_3 = arith.constant 0 : index
    %c0_4 = arith.constant 0 : index
    %3 = vector.load %arg3[%c0_3, %c0_4] : memref<1x32xf32, #tpu.memory_space<vmem>>, vector<1x32xf32>
    %4 = vector.broadcast %3 : vector<1x32xf32> to vector<16x32xf32>
    %5 = arith.addf %2, %4 : vector<16x32xf32>
    %cst_5 = arith.constant 0.353553385 : f32
    %6 = vector.broadcast %cst_5 : f32 to vector<16x32xf32>
    %7 = arith.mulf %5, %6 : vector<16x32xf32>
    %8 = arith.truncf %7 : vector<16x32xf32> to vector<16x32xbf16>
    %c0_6 = arith.constant 0 : index
    %c0_7 = arith.constant 0 : index
    %9 = vector.load %arg8[%c0_6, %c0_7] : memref<16x32xbf16, #tpu.memory_space<vmem>>, vector<16x32xbf16>
    tpu.vector_store %arg8[%c0_6, %c0_7], %8 {strides = array<i32>} : memref<16x32xbf16, #tpu.memory_space<vmem>>, vector<16x32xbf16>,
    %c0_8 = arith.constant 0 : index
    %c0_9 = arith.constant 0 : index
    %10 = vector.load %arg4[%c0_8, %c0_9] : memref<32x32xbf16, #tpu.memory_space<vmem>>, vector<32x32xbf16>
    %cst_10 = arith.constant dense<0.000000e+00> : vector<16x32xf32>
    %11 = tpu.matmul %0, %10, %cst_10 {dimension_numbers = #tpu.dot_dimension_numbers<[1], [0], [0], [1], [0, 0, 1, 1], [], []>} : vector<16x32xbf16>, vector<32x32xbf16>, vector<16x32xf32> -> vector<16x32xf32>
    %c0_11 = arith.constant 0 : index
    %c0_12 = arith.constant 0 : index
    %12 = vector.load %arg5[%c0_11, %c0_12] : memref<1x32xf32, #tpu.memory_space<vmem>>, vector<1x32xf32>
    %13 = vector.broadcast %12 : vector<1x32xf32> to vector<16x32xf32>
    %14 = arith.addf %11, %13 : vector<16x32xf32>
    %15 = arith.truncf %14 : vector<16x32xf32> to vector<16x32xbf16>
    %c0_13 = arith.constant 0 : index
    %c0_14 = arith.constant 0 : index
    %16 = vector.load %arg9[%c0_13, %c0_14] : memref<16x32xbf16, #tpu.memory_space<vmem>>, vector<16x32xbf16>
    tpu.vector_store %arg9[%c0_13, %c0_14], %15 {strides = array<i32>} : memref<16x32xbf16, #tpu.memory_space<vmem>>, vector<16x32xbf16>,
    %c0_15 = arith.constant 0 : index
    %c0_16 = arith.constant 0 : index
    %17 = vector.load %arg6[%c0_15, %c0_16] : memref<32x32xbf16, #tpu.memory_space<vmem>>, vector<32x32xbf16>
    %cst_17 = arith.constant dense<0.000000e+00> : vector<16x32xf32>
    %18 = tpu.matmul %0, %17, %cst_17 {dimension_numbers = #tpu.dot_dimension_numbers<[1], [0], [0], [1], [0, 0, 1, 1], [], []>} : vector<16x32xbf16>, vector<32x32xbf16>, vector<16x32xf32> -> vector<16x32xf32>
    %c0_18 = arith.constant 0 : index
    %c0_19 = arith.constant 0 : index
    %19 = vector.load %arg7[%c0_18, %c0_19] : memref<1x32xf32, #tpu.memory_space<vmem>>, vector<1x32xf32>
    %20 = vector.broadcast %19 : vector<1x32xf32> to vector<16x32xf32>
    %21 = arith.addf %18, %20 : vector<16x32xf32>
    %22 = arith.truncf %21 : vector<16x32xf32> to vector<16x32xbf16>
    %c0_20 = arith.constant 0 : index
    %c0_21 = arith.constant 0 : index
    %23 = vector.load %arg10[%c0_20, %c0_21] : memref<16x32xbf16, #tpu.memory_space<vmem>>, vector<16x32xbf16>
    tpu.vector_store %arg10[%c0_20, %c0_21], %22 {strides = array<i32>} : memref<16x32xbf16, #tpu.memory_space<vmem>>, vector<16x32xbf16>,
    return
  }
  func.func @transform_0(%arg0: i32) -> (i32, i32) {
    %c0_i32 = arith.constant 0 : i32
    %c0_i32_0 = arith.constant 0 : i32
    return %arg0, %c0_i32 : i32, i32
  }
  func.func @transform_1(%arg0: i32) -> (i32, i32) {
    %c0_i32 = arith.constant 0 : i32
    %c0_i32_0 = arith.constant 0 : i32
    %c0_i32_1 = arith.constant 0 : i32
    return %c0_i32, %c0_i32_0 : i32, i32
  }
  func.func @transform_2(%arg0: i32) -> (i32, i32) {
    %c0_i32 = arith.constant 0 : i32
    %c0_i32_0 = arith.constant 0 : i32
    %c0_i32_1 = arith.constant 0 : i32
    return %c0_i32, %c0_i32_0 : i32, i32
  }
  func.func @transform_3(%arg0: i32) -> (i32, i32) {
    %c0_i32 = arith.constant 0 : i32
    %c0_i32_0 = arith.constant 0 : i32
    %c0_i32_1 = arith.constant 0 : i32
    return %c0_i32, %c0_i32_0 : i32, i32
  }
  func.func @transform_4(%arg0: i32) -> (i32, i32) {
    %c0_i32 = arith.constant 0 : i32
    %c0_i32_0 = arith.constant 0 : i32
    %c0_i32_1 = arith.constant 0 : i32
    return %c0_i32, %c0_i32_0 : i32, i32
  }
  func.func @transform_5(%arg0: i32) -> (i32, i32) {
    %c0_i32 = arith.constant 0 : i32
    %c0_i32_0 = arith.constant 0 : i32
    %c0_i32_1 = arith.constant 0 : i32
    return %c0_i32, %c0_i32_0 : i32, i32
  }
  func.func @transform_6(%arg0: i32) -> (i32, i32) {
    %c0_i32 = arith.constant 0 : i32
    %c0_i32_0 = arith.constant 0 : i32
    %c0_i32_1 = arith.constant 0 : i32
    return %c0_i32, %c0_i32_0 : i32, i32
  }
  func.func @transform_7(%arg0: i32) -> (i32, i32) {
    %c0_i32 = arith.constant 0 : i32
    %c0_i32_0 = arith.constant 0 : i32
    return %arg0, %c0_i32 : i32, i32
  }
  func.func @transform_8(%arg0: i32) -> (i32, i32) {
    %c0_i32 = arith.constant 0 : i32
    %c0_i32_0 = arith.constant 0 : i32
    return %arg0, %c0_i32 : i32, i32
  }
  func.func @transform_9(%arg0: i32) -> (i32, i32) {
    %c0_i32 = arith.constant 0 : i32
    %c0_i32_0 = arith.constant 0 : i32
    return %arg0, %c0_i32 : i32, i32
  }
}

module attributes {stable_mosaic.version = 11 : i64} {
  func.func @qkv_proj_kernel(%arg0: i32, %arg1: memref<16x32xbf16, #tpu.memory_space<vmem>>, %arg2: memref<32x32xbf16, #tpu.memory_space<vmem>>, %arg3: memref<1x32xf32, #tpu.memory_space<vmem>>, %arg4: memref<32x32xbf16, #tpu.memory_space<vmem>>, %arg5: memref<1x32xf32, #tpu.memory_space<vmem>>, %arg6: memref<32x32xbf16, #tpu.memory_space<vmem>>, %arg7: memref<1x32xf32, #tpu.memory_space<vmem>>, %arg8: memref<16x32xbf16, #tpu.memory_space<vmem>>, %arg9: memref<16x32xbf16, #tpu.memory_space<vmem>>, %arg10: memref<16x32xbf16, #tpu.memory_space<vmem>>) attributes {dimension_semantics = [#tpu.dimension_semantics<parallel>], iteration_bounds = array<i64: 1>, scalar_prefetch = 0 : i64, scratch_operands = 0 : i64, tpu.core_type = #tpu.core_type<tc>, window_params = [{transform_indices = @transform_0, window_bounds = array<i64: 16, 32>}, {pipeline_mode = #tpu.pipeline_mode<synchronous>, transform_indices = @transform_1, window_bounds = array<i64: 32, 32>}, {pipeline_mode = #tpu.pipeline_mode<synchronous>, transform_indices = @transform_2, window_bounds = array<i64: 1, 32>}, {pipeline_mode = #tpu.pipeline_mode<synchronous>, transform_indices = @transform_3, window_bounds = array<i64: 32, 32>}, {pipeline_mode = #tpu.pipeline_mode<synchronous>, transform_indices = @transform_4, window_bounds = array<i64: 1, 32>}, {pipeline_mode = #tpu.pipeline_mode<synchronous>, transform_indices = @transform_5, window_bounds = array<i64: 32, 32>}, {pipeline_mode = #tpu.pipeline_mode<synchronous>, transform_indices = @transform_6, window_bounds = array<i64: 1, 32>}, {transform_indices = @transform_7, window_bounds = array<i64: 16, 32>}, {transform_indices = @transform_8, window_bounds = array<i64: 16, 32>}, {transform_indices = @transform_9, window_bounds = array<i64: 16, 32>}]} {
    %c0 = arith.constant 0 : index
    %c0_0 = arith.constant 0 : index
    %0 = vector.load %arg1[%c0, %c0_0] : memref<16x32xbf16, #tpu.memory_space<vmem>>, vector<16x32xbf16>
    %c0_1 = arith.constant 0 : index
    %c0_2 = arith.constant 0 : index
    %1 = vector.load %arg2[%c0_1, %c0_2] : memref<32x32xbf16, #tpu.memory_space<vmem>>, vector<32x32xbf16>
    %cst = arith.constant dense<0.000000e+00> : vector<16x32xf32>
    %2 = tpu.matmul %0, %1, %cst {dimension_numbers = #tpu.dot_dimension_numbers<[1], [0], [0], [1], [0, 0, 1, 1], [], []>} : vector<16x32xbf16>, vector<32x32xbf16>, vector<16x32xf32> -> vector<16x32xf32>
    %c0_3 = arith.constant 0 : index
    %c0_4 = arith.constant 0 : index
    %3 = vector.load %arg3[%c0_3, %c0_4] : memref<1x32xf32, #tpu.memory_space<vmem>>, vector<1x32xf32>
    %4 = vector.broadcast %3 : vector<1x32xf32> to vector<16x32xf32>
    %5 = arith.addf %2, %4 : vector<16x32xf32>
    %cst_5 = arith.constant 0.353553385 : f32
    %6 = vector.broadcast %cst_5 : f32 to vector<16x32xf32>
    %7 = arith.mulf %5, %6 : vector<16x32xf32>
    %8 = arith.truncf %7 : vector<16x32xf32> to vector<16x32xbf16>
    %c0_6 = arith.constant 0 : index
    %c0_7 = arith.constant 0 : index
    %9 = vector.load %arg8[%c0_6, %c0_7] : memref<16x32xbf16, #tpu.memory_space<vmem>>, vector<16x32xbf16>
    tpu.vector_store %arg8[%c0_6, %c0_7], %8 {strides = array<i32>} : memref<16x32xbf16, #tpu.memory_space<vmem>>, vector<16x32xbf16>,
    %c0_8 = arith.constant 0 : index
    %c0_9 = arith.constant 0 : index
    %10 = vector.load %arg4[%c0_8, %c0_9] : memref<32x32xbf16, #tpu.memory_space<vmem>>, vector<32x32xbf16>
    %cst_10 = arith.constant dense<0.000000e+00> : vector<16x32xf32>
    %11 = tpu.matmul %0, %10, %cst_10 {dimension_numbers = #tpu.dot_dimension_numbers<[1], [0], [0], [1], [0, 0, 1, 1], [], []>} : vector<16x32xbf16>, vector<32x32xbf16>, vector<16x32xf32> -> vector<16x32xf32>
    %c0_11 = arith.constant 0 : index
    %c0_12 = arith.constant 0 : index
    %12 = vector.load %arg5[%c0_11, %c0_12] : memref<1x32xf32, #tpu.memory_space<vmem>>, vector<1x32xf32>
    %13 = vector.broadcast %12 : vector<1x32xf32> to vector<16x32xf32>
    %14 = arith.addf %11, %13 : vector<16x32xf32>
    %15 = arith.truncf %14 : vector<16x32xf32> to vector<16x32xbf16>
    %c0_13 = arith.constant 0 : index
    %c0_14 = arith.constant 0 : index
    %16 = vector.load %arg9[%c0_13, %c0_14] : memref<16x32xbf16, #tpu.memory_space<vmem>>, vector<16x32xbf16>
    tpu.vector_store %arg9[%c0_13, %c0_14], %15 {strides = array<i32>} : memref<16x32xbf16, #tpu.memory_space<vmem>>, vector<16x32xbf16>,
    %c0_15 = arith.constant 0 : index
    %c0_16 = arith.constant 0 : index
    %17 = vector.load %arg6[%c0_15, %c0_16] : memref<32x32xbf16, #tpu.memory_space<vmem>>, vector<32x32xbf16>
    %cst_17 = arith.constant dense<0.000000e+00> : vector<16x32xf32>
    %18 = tpu.matmul %0, %17, %cst_17 {dimension_numbers = #tpu.dot_dimension_numbers<[1], [0], [0], [1], [0, 0, 1, 1], [], []>} : vector<16x32xbf16>, vector<32x32xbf16>, vector<16x32xf32> -> vector<16x32xf32>
    %c0_18 = arith.constant 0 : index
    %c0_19 = arith.constant 0 : index
    %19 = vector.load %arg7[%c0_18, %c0_19] : memref<1x32xf32, #tpu.memory_space<vmem>>, vector<1x32xf32>
    %20 = vector.broadcast %19 : vector<1x32xf32> to vector<16x32xf32>
    %21 = arith.addf %18, %20 : vector<16x32xf32>
    %22 = arith.truncf %21 : vector<16x32xf32> to vector<16x32xbf16>
    %c0_20 = arith.constant 0 : index
    %c0_21 = arith.constant 0 : index
    %23 = vector.load %arg10[%c0_20, %c0_21] : memref<16x32xbf16, #tpu.memory_space<vmem>>, vector<16x32xbf16>
    tpu.vector_store %arg10[%c0_20, %c0_21], %22 {strides = array<i32>} : memref<16x32xbf16, #tpu.memory_space<vmem>>, vector<16x32xbf16>,
    return
  }
  func.func @transform_0(%arg0: i32) -> (i32, i32) {
    %c0_i32 = arith.constant 0 : i32
    %c0_i32_0 = arith.constant 0 : i32
    return %arg0, %c0_i32 : i32, i32
  }
  func.func @transform_1(%arg0: i32) -> (i32, i32) {
    %c0_i32 = arith.constant 0 : i32
    %c0_i32_0 = arith.constant 0 : i32
    %c0_i32_1 = arith.constant 0 : i32
    return %c0_i32, %c0_i32_0 : i32, i32
  }
  func.func @transform_2(%arg0: i32) -> (i32, i32) {
    %c0_i32 = arith.constant 0 : i32
    %c0_i32_0 = arith.constant 0 : i32
    %c0_i32_1 = arith.constant 0 : i32
    return %c0_i32, %c0_i32_0 : i32, i32
  }
  func.func @transform_3(%arg0: i32) -> (i32, i32) {
    %c0_i32 = arith.constant 0 : i32
    %c0_i32_0 = arith.constant 0 : i32
    %c0_i32_1 = arith.constant 0 : i32
    return %c0_i32, %c0_i32_0 : i32, i32
  }
  func.func @transform_4(%arg0: i32) -> (i32, i32) {
    %c0_i32 = arith.constant 0 : i32
    %c0_i32_0 = arith.constant 0 : i32
    %c0_i32_1 = arith.constant 0 : i32
    return %c0_i32, %c0_i32_0 : i32, i32
  }
  func.func @transform_5(%arg0: i32) -> (i32, i32) {
    %c0_i32 = arith.constant 0 : i32
    %c0_i32_0 = arith.constant 0 : i32
    %c0_i32_1 = arith.constant 0 : i32
    return %c0_i32, %c0_i32_0 : i32, i32
  }
  func.func @transform_6(%arg0: i32) -> (i32, i32) {
    %c0_i32 = arith.constant 0 : i32
    %c0_i32_0 = arith.constant 0 : i32
    %c0_i32_1 = arith.constant 0 : i32
    return %c0_i32, %c0_i32_0 : i32, i32
  }
  func.func @transform_7(%arg0: i32) -> (i32, i32) {
    %c0_i32 = arith.constant 0 : i32
    %c0_i32_0 = arith.constant 0 : i32
    return %arg0, %c0_i32 : i32, i32
  }
  func.func @transform_8(%arg0: i32) -> (i32, i32) {
    %c0_i32 = arith.constant 0 : i32
    %c0_i32_0 = arith.constant 0 : i32
    return %arg0, %c0_i32 : i32, i32
  }
  func.func @transform_9(%arg0: i32) -> (i32, i32) {
    %c0_i32 = arith.constant 0 : i32
    %c0_i32_0 = arith.constant 0 : i32
    return %arg0, %c0_i32 : i32, i32
  }
}

</mosaic_0001>

<llo_original>
// kernel: tpu_custom_call.1
$region0: #{tpu_custom_call.1}
  #allocation0 [shape = 'u32[]', space=smem, size = 0x4, offset = 0x4, fixed_abs, tag = 'smem constant byte address 0x4 - core index']
  #allocation1 [shape = 'u32[144,128]{1,0:T(1,128)}', space=vmem, size = 0x12000, scoped, tag = 'internal scratch']
  %s0 = inlined_call_operand.hbm [shape: bf16[16,32], index: 0, kind: input, shape index: {}]
  %s1 = inlined_call_operand.hbm [shape: bf16[32,32], index: 1, kind: input, shape index: {}]
  %s2 = inlined_call_operand.vmem [shape: f32[1,32], index: 2, kind: input, shape index: {}]
  %s3 = inlined_call_operand.hbm [shape: bf16[32,32], index: 3, kind: input, shape index: {}]
  %s4 = inlined_call_operand.vmem [shape: f32[1,32], index: 4, kind: input, shape index: {}]
  %s5 = inlined_call_operand.vmem [shape: bf16[32,32], index: 5, kind: input, shape index: {}]
  %s6 = inlined_call_operand.vmem [shape: f32[1,32], index: 6, kind: input, shape index: {}]
  %s7 = inlined_call_operand.hbm [shape: bf16[16,32], index: 7, kind: output, shape index: {0}]
  %s8 = inlined_call_operand.hbm [shape: bf16[16,32], index: 8, kind: output, shape index: {1}]
  %s9 = inlined_call_operand.hbm [shape: bf16[16,32], index: 9, kind: output, shape index: {2}]
  %10 = xla_tuple %s7, %s8, %s9
  %s11 = sld [smem:[#allocation0]]
  $region66: #{tpu_custom_call.1} parent=0
    _
  %s13 = ssub.s32 1, %s11
  %s14 = scalar_select 0, %s13, %s11
  $region1: #{tpu_custom_call.1} parent=0
    #allocation2 [shape = 'u8[4096]{0}', space=vmem, size = 0x1000, scoped, tag = 'input window, operand 0, single buffered']
    #allocation3 [shape = 's32[1]{0}', space=sflag, size = 0x4, scoped, tag = 'scoped memory for tpu_custom_call.1']
    #allocation4 [shape = 's32[1]{0}', space=sflag, size = 0x4, scoped, tag = 'scoped memory for tpu_custom_call.1']
    #allocation5 [shape = 'u8[8192]{0}', space=vmem, size = 0x2000, scoped, tag = 'input window, operand 1, single buffered']
    #allocation6 [shape = 's32[1]{0}', space=sflag, size = 0x4, scoped, tag = 'scoped memory for tpu_custom_call.1']
    #allocation7 [shape = 'u8[8192]{0}', space=vmem, size = 0x2000, scoped, tag = 'input window, operand 3, single buffered']
    #allocation8 [shape = 'u8[4096]{0}', space=vmem, size = 0x1000, scoped, tag = 'output window, operand 0, single buffered']
    #allocation9 [shape = 'u8[4096]{0}', space=vmem, size = 0x1000, scoped, tag = 'output window, operand 1, single buffered']
    #allocation10 [shape = 's32[1]{0}', space=sflag, size = 0x4, scoped, tag = 'scoped memory for tpu_custom_call.1']
    #allocation11 [shape = 'u8[4096]{0}', space=vmem, size = 0x1000, scoped, tag = 'output window, operand 2, single buffered']
    %15 = vsyncpa [#allocation3], 0
    %16 = vsyncpa [#allocation6], 0
    %17 = vsyncpa [#allocation4], 0
    %18 = vsyncpa [#allocation10], 0
    // Predicated region
    $region2: #{tpu_custom_call.1} parent=1 // pred_check
      _
    $region3: #{tpu_custom_call.1} parent=1 // pred_check_branch
      %20 = sbr.rel (0) target = $region5
    $region4: #{tpu_custom_call.1} parent=1 // pred_region
      %s22 = ssub.s32 128, 128
      %23 = vsyncadd [#allocation3], %s22
      %s24 = sshll.u32 [#allocation2], 4
      %s25 = int_to_ptr.vmem [resolvable:$true] %s24
      %30 = dma.hbm_to_vmem [thread:$0]  %s0, 128, %s25, [#allocation3], 64, 64, 4
    $region5: #{tpu_custom_call.1} parent=1 // pred_fallthru
      _
    // Predicated region
    $region6: #{tpu_custom_call.1} parent=1 // pred_check
      _
    $region7: #{tpu_custom_call.1} parent=1 // pred_check_branch
      %32 = sbr.rel (0) target = $region9
    $region8: #{tpu_custom_call.1} parent=1 // pred_region
      %s34 = ssub.s32 256, 256
      %35 = vsyncadd [#allocation6], %s34
      %s36 = sshll.u32 [#allocation5], 4
      %s37 = int_to_ptr.vmem [resolvable:$true] %s36
      %42 = dma.hbm_to_vmem [thread:$0]  %s1, 256, %s37, [#allocation6], 64, 64, 4
    $region9: #{tpu_custom_call.1} parent=1 // pred_fallthru
      _
    // Predicated region
    $region10: #{tpu_custom_call.1} parent=1 // pred_check
      _
    $region11: #{tpu_custom_call.1} parent=1 // pred_check_branch
      %44 = sbr.rel (0) target = $region13
    $region12: #{tpu_custom_call.1} parent=1 // pred_region
      _
    $region13: #{tpu_custom_call.1} parent=1 // pred_fallthru
      _
    // Predicated region
    $region14: #{tpu_custom_call.1} parent=1 // pred_check
      _
    $region15: #{tpu_custom_call.1} parent=1 // pred_check_branch
      %46 = sbr.rel (0) target = $region17
    $region16: #{tpu_custom_call.1} parent=1 // pred_region
      %s48 = ssub.s32 256, 256
      %49 = vsyncadd [#allocation6], %s48
      %s50 = sshll.u32 [#allocation7], 4
      %s51 = int_to_ptr.vmem [resolvable:$true] %s50
      %56 = dma.hbm_to_vmem [thread:$0]  %s3, 256, %s51, [#allocation6], 64, 64, 4
    $region17: #{tpu_custom_call.1} parent=1 // pred_fallthru
      _
    // Predicated region
    $region18: #{tpu_custom_call.1} parent=1 // pred_check
      _
    $region19: #{tpu_custom_call.1} parent=1 // pred_check_branch
      %58 = sbr.rel (0) target = $region21
    $region20: #{tpu_custom_call.1} parent=1 // pred_region
      _
    $region21: #{tpu_custom_call.1} parent=1 // pred_fallthru
      _
    // Predicated region
    $region22: #{tpu_custom_call.1} parent=1 // pred_check
      _
    $region23: #{tpu_custom_call.1} parent=1 // pred_check_branch
      %60 = sbr.rel (0) target = $region25
    $region24: #{tpu_custom_call.1} parent=1 // pred_region
      _
    $region25: #{tpu_custom_call.1} parent=1 // pred_fallthru
      _
    // Predicated region
    $region26: #{tpu_custom_call.1} parent=1 // pred_check
      _
    $region27: #{tpu_custom_call.1} parent=1 // pred_check_branch
      %62 = sbr.rel (0) target = $region29
    $region28: #{tpu_custom_call.1} parent=1 // pred_region
      _
    $region29: #{tpu_custom_call.1} parent=1 // pred_fallthru
      _
    // Predicated region
    $region30: #{tpu_custom_call.1} parent=1 // pred_check
      _
    $region31: #{tpu_custom_call.1} parent=1 // pred_check_branch
      %64 = sbr.rel (0) target = $region33
    $region32: #{tpu_custom_call.1} parent=1 // pred_region
      %65 = dma.done [#allocation3], 128
    $region33: #{tpu_custom_call.1} parent=1 // pred_fallthru
      _
    // Predicated region
    $region34: #{tpu_custom_call.1} parent=1 // pred_check
      _
    $region35: #{tpu_custom_call.1} parent=1 // pred_check_branch
      %67 = sbr.rel (0) target = $region37
    $region36: #{tpu_custom_call.1} parent=1 // pred_region
      %68 = dma.done [#allocation6], 256
    $region37: #{tpu_custom_call.1} parent=1 // pred_fallthru
      _
    // Predicated region
    $region38: #{tpu_custom_call.1} parent=1 // pred_check
      _
    $region39: #{tpu_custom_call.1} parent=1 // pred_check_branch
      %70 = sbr.rel (0) target = $region41
    $region40: #{tpu_custom_call.1} parent=1 // pred_region
      %71 = dma.done [#allocation6], 256
    $region41: #{tpu_custom_call.1} parent=1 // pred_fallthru
      _
    %v73 = vld [vmem:[#allocation2] sm:$0xf]
    %v74 = vld [vmem:[#allocation2 + $0x4] sm:$0xf]
    %v75 = vld [vmem:[#allocation5] sm:$0xf]
    %v76 = vld [vmem:[#allocation5 + $0x4] sm:$0xf]
    %v77 = vld [vmem:[#allocation5 + $0x8] sm:$0xf]
    %v78 = vld [vmem:[#allocation5 + $0xc] sm:$0xf]
    %v79 = vld [vmem:[%s2] sm:$0x1]
    %v81 = vlaneseq
    %v82 = vshrl.u32 %v81, 7
    %v83 = vsub.s32 0, %v82
    %v84 = vrot.slane %v79, %v83
    %v88 = vunpack.c.l.b16 %v73
    %v89 = vunpack.c.l.b16 %v74
    %v90 = vpack.c.b16 %v89, %v88
    %v95 = vunpack.c.l.b16 %v75
    %v96 = vunpack.c.l.b16 %v76
    %v97 = vunpack.c.l.b16 %v77
    %v98 = vunpack.c.l.b16 %v78
    %v99 = vpack.c.b16 %v96, %v95
    %v100 = vpack.c.b16 %v98, %v97
    %vm103 = vcmask 261120
    %v105 = vsel %vm103, %v90, 0
    %107 = vmatprep.subr.bf16.mxu0 0
    %108 = vmatpush1.bf16.msra.mxu0 %v99
    %109 = vmatprep.subr.bf16.mxu0 0
    %110 = vmatpush1.bf16.msra.mxu0 %v100
    %111 = vmatprep.subr.bf16.mxu0 0
    %112 = vmatpush1.bf16.msra.mxu0 0
    %113 = vmatprep.subr.bf16.mxu0 0
    %114 = vmatpush1.bf16.msra.mxu0 0
    %115 = vmatprep.subr.bf16.mxu0 0
    %116 = vmatpush1.bf16.msra.mxu0 0
    %117 = vmatprep.subr.bf16.mxu0 0
    %118 = vmatpush1.bf16.msra.mxu0 0
    %119 = vmatprep.subr.bf16.mxu0 0
    %120 = vmatpush1.bf16.msra.mxu0 0
    %121 = vmatprep.subr.bf16.mxu0 0
    %122 = vmatpush1.bf16.msra.mxu0 0
    %123 = vmatprep.subr.bf16.mxu0 0
    %124 = vmatpush1.bf16.msra.mxu0 0
    %125 = vmatprep.subr.bf16.mxu0 0
    %126 = vmatpush1.bf16.msra.mxu0 0
    %127 = vmatprep.subr.bf16.mxu0 0
    %128 = vmatpush1.bf16.msra.mxu0 0
    %129 = vmatprep.subr.bf16.mxu0 0
    %130 = vmatpush1.bf16.msra.mxu0 0
    %131 = vmatprep.subr.bf16.mxu0 0
    %132 = vmatpush1.bf16.msra.mxu0 0
    %133 = vmatprep.subr.bf16.mxu0 0
    %134 = vmatpush1.bf16.msra.mxu0 0
    %135 = vmatprep.subr.bf16.mxu0 0
    %136 = vmatpush1.bf16.msra.mxu0 0
    %137 = vmatprep.subr.bf16.mxu0 0
    %138 = vmatpush1.bf16.msra.mxu0 0
    %139 = vmatprep.mubr.bf16.mxu0 0
    %140 = vmatmul.mubr.bf16.gmra.mrb[0].mxu0 %v105
    %v141 = vpop.f32.mrb[0].mxu0
    %v142 = vadd.f32 %v84, %v141
    %v143 = vpop.f32.mrb[0].mxu0
    %v144 = vpop.f32.mrb[0].mxu0
    %v145 = vadd.f32 %v84, %v144
    %v146 = vpop.f32.mrb[0].mxu0
    %147 = vdwg.mxu0
    %v148 = vmul.f32 %v142, 0.35355338
    %v149 = vmul.f32 %v145, 0.35355338
    %v150 = vpack.c.bf16 %v149, %v148
    %v152 = vunpack.c.l.b16 %v150
    %v153 = vunpack.c.h.b16 %v150
    %v154 = vpack.c.b16 %v152, %v152
    %v155 = vpack.c.b16 %v153, %v153
    %vm158 = vcmask 257024
    %159 = vst.msk [vmem:[#allocation8] sm:$0xf] %vm158, %v154
    %160 = vst.msk [vmem:[#allocation8 + $0x4] sm:$0xf] %vm158, %v155
    %v161 = vld [vmem:[#allocation7] sm:$0xf]
    %v162 = vld [vmem:[#allocation7 + $0x4] sm:$0xf]
    %v163 = vld [vmem:[#allocation7 + $0x8] sm:$0xf]
    %v164 = vld [vmem:[#allocation7 + $0xc] sm:$0xf]
    %v165 = vld [vmem:[%s4] sm:$0x1]
    %v167 = vlaneseq
    %v168 = vshrl.u32 %v167, 7
    %v169 = vsub.s32 0, %v168
    %v170 = vrot.slane %v165, %v169
    %v176 = vunpack.c.l.b16 %v161
    %v177 = vunpack.c.l.b16 %v162
    %v178 = vunpack.c.l.b16 %v163
    %v179 = vunpack.c.l.b16 %v164
    %v180 = vpack.c.b16 %v177, %v176
    %v181 = vpack.c.b16 %v179, %v178
    %184 = vmatprep.subr.bf16.mxu0 0
    %185 = vmatpush1.bf16.msra.mxu0 %v180
    %186 = vmatprep.subr.bf16.mxu0 0
    %187 = vmatpush1.bf16.msra.mxu0 %v181
    %188 = vmatprep.subr.bf16.mxu0 0
    %189 = vmatpush1.bf16.msra.mxu0 0
    %190 = vmatprep.subr.bf16.mxu0 0
    %191 = vmatpush1.bf16.msra.mxu0 0
    %192 = vmatprep.subr.bf16.mxu0 0
    %193 = vmatpush1.bf16.msra.mxu0 0
    %194 = vmatprep.subr.bf16.mxu0 0
    %195 = vmatpush1.bf16.msra.mxu0 0
    %196 = vmatprep.subr.bf16.mxu0 0
    %197 = vmatpush1.bf16.msra.mxu0 0
    %198 = vmatprep.subr.bf16.mxu0 0
    %199 = vmatpush1.bf16.msra.mxu0 0
    %200 = vmatprep.subr.bf16.mxu0 0
    %201 = vmatpush1.bf16.msra.mxu0 0
    %202 = vmatprep.subr.bf16.mxu0 0
    %203 = vmatpush1.bf16.msra.mxu0 0
    %204 = vmatprep.subr.bf16.mxu0 0
    %205 = vmatpush1.bf16.msra.mxu0 0
    %206 = vmatprep.subr.bf16.mxu0 0
    %207 = vmatpush1.bf16.msra.mxu0 0
    %208 = vmatprep.subr.bf16.mxu0 0
    %209 = vmatpush1.bf16.msra.mxu0 0
    %210 = vmatprep.subr.bf16.mxu0 0
    %211 = vmatpush1.bf16.msra.mxu0 0
    %212 = vmatprep.subr.bf16.mxu0 0
    %213 = vmatpush1.bf16.msra.mxu0 0
    %214 = vmatprep.subr.bf16.mxu0 0
    %215 = vmatpush1.bf16.msra.mxu0 0
    %216 = vmatprep.mubr.bf16.mxu0 0
    %217 = vmatmul.mubr.bf16.gmra.mrb[0].mxu0 %v105
    %v218 = vpop.f32.mrb[0].mxu0
    %v219 = vadd.f32 %v170, %v218
    %v220 = vpop.f32.mrb[0].mxu0
    %v221 = vpop.f32.mrb[0].mxu0
    %v222 = vadd.f32 %v170, %v221
    %v223 = vpop.f32.mrb[0].mxu0
    %224 = vdwg.mxu0
    %v225 = vpack.c.bf16 %v222, %v219
    %v227 = vunpack.c.l.b16 %v225
    %v228 = vunpack.c.h.b16 %v225
    %v229 = vpack.c.b16 %v227, %v227
    %v230 = vpack.c.b16 %v228, %v228
    %233 = vst.msk [vmem:[#allocation9] sm:$0xf] %vm158, %v229
    %234 = vst.msk [vmem:[#allocation9 + $0x4] sm:$0xf] %vm158, %v230
    %v235 = vld [vmem:[%s5] sm:$0xf]
    %v236 = vld [vmem:[%s5 + $0x4] sm:$0xf]
    %v237 = vld [vmem:[%s5 + $0x8] sm:$0xf]
    %v238 = vld [vmem:[%s5 + $0xc] sm:$0xf]
    %v239 = vld [vmem:[%s6] sm:$0x1]
    %v241 = vlaneseq
    %v242 = vshrl.u32 %v241, 7
    %v243 = vsub.s32 0, %v242
    %v244 = vrot.slane %v239, %v243
    %v250 = vunpack.c.l.b16 %v235
    %v251 = vunpack.c.l.b16 %v236
    %v252 = vunpack.c.l.b16 %v237
    %v253 = vunpack.c.l.b16 %v238
    %v254 = vpack.c.b16 %v251, %v250
    %v255 = vpack.c.b16 %v253, %v252
    %258 = vmatprep.subr.bf16.mxu0 0
    %259 = vmatpush1.bf16.msra.mxu0 %v254
    %260 = vmatprep.subr.bf16.mxu0 0
    %261 = vmatpush1.bf16.msra.mxu0 %v255
    %262 = vmatprep.subr.bf16.mxu0 0
    %263 = vmatpush1.bf16.msra.mxu0 0
    %264 = vmatprep.subr.bf16.mxu0 0
    %265 = vmatpush1.bf16.msra.mxu0 0
    %266 = vmatprep.subr.bf16.mxu0 0
    %267 = vmatpush1.bf16.msra.mxu0 0
    %268 = vmatprep.subr.bf16.mxu0 0
    %269 = vmatpush1.bf16.msra.mxu0 0
    %270 = vmatprep.subr.bf16.mxu0 0
    %271 = vmatpush1.bf16.msra.mxu0 0
    %272 = vmatprep.subr.bf16.mxu0 0
    %273 = vmatpush1.bf16.msra.mxu0 0
    %274 = vmatprep.subr.bf16.mxu0 0
    %275 = vmatpush1.bf16.msra.mxu0 0
    %276 = vmatprep.subr.bf16.mxu0 0
    %277 = vmatpush1.bf16.msra.mxu0 0
    %278 = vmatprep.subr.bf16.mxu0 0
    %279 = vmatpush1.bf16.msra.mxu0 0
    %280 = vmatprep.subr.bf16.mxu0 0
    %281 = vmatpush1.bf16.msra.mxu0 0
    %282 = vmatprep.subr.bf16.mxu0 0
    %283 = vmatpush1.bf16.msra.mxu0 0
    %284 = vmatprep.subr.bf16.mxu0 0
    %285 = vmatpush1.bf16.msra.mxu0 0
    %286 = vmatprep.subr.bf16.mxu0 0
    %287 = vmatpush1.bf16.msra.mxu0 0
    %288 = vmatprep.subr.bf16.mxu0 0
    %289 = vmatpush1.bf16.msra.mxu0 0
    %290 = vmatprep.mubr.bf16.mxu0 0
    %291 = vmatmul.mubr.bf16.gmra.mrb[0].mxu0 %v105
    %v292 = vpop.f32.mrb[0].mxu0
    %v293 = vadd.f32 %v244, %v292
    %v294 = vpop.f32.mrb[0].mxu0
    %v295 = vpop.f32.mrb[0].mxu0
    %v296 = vadd.f32 %v244, %v295
    %v297 = vpop.f32.mrb[0].mxu0
    %298 = vdwg.mxu0
    %v299 = vpack.c.bf16 %v296, %v293
    %v301 = vunpack.c.l.b16 %v299
    %v302 = vunpack.c.h.b16 %v299
    %v303 = vpack.c.b16 %v301, %v301
    %v304 = vpack.c.b16 %v302, %v302
    %307 = vst.msk [vmem:[#allocation11] sm:$0xf] %vm158, %v303
    %308 = vst.msk [vmem:[#allocation11 + $0x4] sm:$0xf] %vm158, %v304
    // Predicated region
    $region42: #{tpu_custom_call.1} parent=1 // pred_check
      _
    $region43: #{tpu_custom_call.1} parent=1 // pred_check_branch
      %310 = sbr.rel (0) target = $region45
    $region44: #{tpu_custom_call.1} parent=1 // pred_region
      %s312 = ssub.s32 128, 128
      %313 = vsyncadd [#allocation4], %s312
      %s314 = sshll.u32 [#allocation8], 4
      %s315 = int_to_ptr.vmem [resolvable:$true] %s314
      %320 = dma.vmem_to_hbm [thread:$0]  %s315, 128, %s7, [#allocation4], 64, 64, 4
    $region45: #{tpu_custom_call.1} parent=1 // pred_fallthru
      _
    // Predicated region
    $region46: #{tpu_custom_call.1} parent=1 // pred_check
      _
    $region47: #{tpu_custom_call.1} parent=1 // pred_check_branch
      %322 = sbr.rel (0) target = $region49
    $region48: #{tpu_custom_call.1} parent=1 // pred_region
      %s324 = ssub.s32 128, 128
      %325 = vsyncadd [#allocation10], %s324
      %s326 = sshll.u32 [#allocation9], 4
      %s327 = int_to_ptr.vmem [resolvable:$true] %s326
      %332 = dma.vmem_to_hbm [thread:$0]  %s327, 128, %s8, [#allocation10], 64, 64, 4
    $region49: #{tpu_custom_call.1} parent=1 // pred_fallthru
      _
    // Predicated region
    $region50: #{tpu_custom_call.1} parent=1 // pred_check
      _
    $region51: #{tpu_custom_call.1} parent=1 // pred_check_branch
      %334 = sbr.rel (0) target = $region53
    $region52: #{tpu_custom_call.1} parent=1 // pred_region
      %s336 = ssub.s32 128, 128
      %337 = vsyncadd [#allocation10], %s336
      %s338 = sshll.u32 [#allocation11], 4
      %s339 = int_to_ptr.vmem [resolvable:$true] %s338
      %344 = dma.vmem_to_hbm [thread:$0]  %s339, 128, %s9, [#allocation10], 64, 64, 4
    $region53: #{tpu_custom_call.1} parent=1 // pred_fallthru
      _
    // Predicated region
    $region54: #{tpu_custom_call.1} parent=1 // pred_check
      _
    $region55: #{tpu_custom_call.1} parent=1 // pred_check_branch
      %346 = sbr.rel (0) target = $region57
    $region56: #{tpu_custom_call.1} parent=1 // pred_region
      %347 = dma.done [#allocation4], 128
    $region57: #{tpu_custom_call.1} parent=1 // pred_fallthru
      _
    // Predicated region
    $region58: #{tpu_custom_call.1} parent=1 // pred_check
      _
    $region59: #{tpu_custom_call.1} parent=1 // pred_check_branch
      %349 = sbr.rel (0) target = $region61
    $region60: #{tpu_custom_call.1} parent=1 // pred_region
      %350 = dma.done [#allocation10], 128
    $region61: #{tpu_custom_call.1} parent=1 // pred_fallthru
      _
    // Predicated region
    $region62: #{tpu_custom_call.1} parent=1 // pred_check
      _
    $region63: #{tpu_custom_call.1} parent=1 // pred_check_branch
      %352 = sbr.rel (0) target = $region65
    $region64: #{tpu_custom_call.1} parent=1 // pred_region
      %353 = dma.done [#allocation10], 128
    $region65: #{tpu_custom_call.1} parent=1 // pred_fallthru
      _
    %354 = vsyncpa [#allocation3], 1
    %355 = vsyncpa [#allocation6], 1
    %356 = vsyncpa [#allocation4], 1
    %357 = vsyncpa [#allocation10], 1

// kernel: tpu_custom_call.1
$region0: #{tpu_custom_call.1}
  #allocation0 [shape = 'u32[]', space=smem, size = 0x4, offset = 0x4, fixed_abs, tag = 'smem constant byte address 0x4 - core index']
  #allocation1 [shape = 'u32[144,128]{1,0:T(1,128)}', space=vmem, size = 0x12000, scoped, tag = 'internal scratch']
  %s0 = inlined_call_operand.hbm [shape: bf16[16,32], index: 0, kind: input, shape index: {}]
  %s1 = inlined_call_operand.hbm [shape: bf16[32,32], index: 1, kind: input, shape index: {}]
  %s2 = inlined_call_operand.vmem [shape: f32[1,32], index: 2, kind: input, shape index: {}]
  %s3 = inlined_call_operand.hbm [shape: bf16[32,32], index: 3, kind: input, shape index: {}]
  %s4 = inlined_call_operand.vmem [shape: f32[1,32], index: 4, kind: input, shape index: {}]
  %s5 = inlined_call_operand.vmem [shape: bf16[32,32], index: 5, kind: input, shape index: {}]
  %s6 = inlined_call_operand.vmem [shape: f32[1,32], index: 6, kind: input, shape index: {}]
  %s7 = inlined_call_operand.hbm [shape: bf16[16,32], index: 7, kind: output, shape index: {0}]
  %s8 = inlined_call_operand.hbm [shape: bf16[16,32], index: 8, kind: output, shape index: {1}]
  %s9 = inlined_call_operand.hbm [shape: bf16[16,32], index: 9, kind: output, shape index: {2}]
  %10 = xla_tuple %s7, %s8, %s9
  %s11 = sld [smem:[#allocation0]]
  $region66: #{tpu_custom_call.1} parent=0
    _
  %s13 = ssub.s32 1, %s11
  %s14 = scalar_select 0, %s13, %s11
  $region1: #{tpu_custom_call.1} parent=0
    #allocation2 [shape = 'u8[4096]{0}', space=vmem, size = 0x1000, scoped, tag = 'input window, operand 0, single buffered']
    #allocation3 [shape = 's32[1]{0}', space=sflag, size = 0x4, scoped, tag = 'scoped memory for tpu_custom_call.1']
    #allocation4 [shape = 's32[1]{0}', space=sflag, size = 0x4, scoped, tag = 'scoped memory for tpu_custom_call.1']
    #allocation5 [shape = 'u8[8192]{0}', space=vmem, size = 0x2000, scoped, tag = 'input window, operand 1, single buffered']
    #allocation6 [shape = 's32[1]{0}', space=sflag, size = 0x4, scoped, tag = 'scoped memory for tpu_custom_call.1']
    #allocation7 [shape = 'u8[8192]{0}', space=vmem, size = 0x2000, scoped, tag = 'input window, operand 3, single buffered']
    #allocation8 [shape = 'u8[4096]{0}', space=vmem, size = 0x1000, scoped, tag = 'output window, operand 0, single buffered']
    #allocation9 [shape = 'u8[4096]{0}', space=vmem, size = 0x1000, scoped, tag = 'output window, operand 1, single buffered']
    #allocation10 [shape = 's32[1]{0}', space=sflag, size = 0x4, scoped, tag = 'scoped memory for tpu_custom_call.1']
    #allocation11 [shape = 'u8[4096]{0}', space=vmem, size = 0x1000, scoped, tag = 'output window, operand 2, single buffered']
    %15 = vsyncpa [#allocation3], 0
    %16 = vsyncpa [#allocation6], 0
    %17 = vsyncpa [#allocation4], 0
    %18 = vsyncpa [#allocation10], 0
    // Predicated region
    $region2: #{tpu_custom_call.1} parent=1 // pred_check
      _
    $region3: #{tpu_custom_call.1} parent=1 // pred_check_branch
      %20 = sbr.rel (0) target = $region5
    $region4: #{tpu_custom_call.1} parent=1 // pred_region
      %s22 = ssub.s32 128, 128
      %23 = vsyncadd [#allocation3], %s22
      %s24 = sshll.u32 [#allocation2], 4
      %s25 = int_to_ptr.vmem [resolvable:$true] %s24
      %30 = dma.hbm_to_vmem [thread:$0]  %s0, 128, %s25, [#allocation3], 64, 64, 4
    $region5: #{tpu_custom_call.1} parent=1 // pred_fallthru
      _
    // Predicated region
    $region6: #{tpu_custom_call.1} parent=1 // pred_check
      _
    $region7: #{tpu_custom_call.1} parent=1 // pred_check_branch
      %32 = sbr.rel (0) target = $region9
    $region8: #{tpu_custom_call.1} parent=1 // pred_region
      %s34 = ssub.s32 256, 256
      %35 = vsyncadd [#allocation6], %s34
      %s36 = sshll.u32 [#allocation5], 4
      %s37 = int_to_ptr.vmem [resolvable:$true] %s36
      %42 = dma.hbm_to_vmem [thread:$0]  %s1, 256, %s37, [#allocation6], 64, 64, 4
    $region9: #{tpu_custom_call.1} parent=1 // pred_fallthru
      _
    // Predicated region
    $region10: #{tpu_custom_call.1} parent=1 // pred_check
      _
    $region11: #{tpu_custom_call.1} parent=1 // pred_check_branch
      %44 = sbr.rel (0) target = $region13
    $region12: #{tpu_custom_call.1} parent=1 // pred_region
      _
    $region13: #{tpu_custom_call.1} parent=1 // pred_fallthru
      _
    // Predicated region
    $region14: #{tpu_custom_call.1} parent=1 // pred_check
      _
    $region15: #{tpu_custom_call.1} parent=1 // pred_check_branch
      %46 = sbr.rel (0) target = $region17
    $region16: #{tpu_custom_call.1} parent=1 // pred_region
      %s48 = ssub.s32 256, 256
      %49 = vsyncadd [#allocation6], %s48
      %s50 = sshll.u32 [#allocation7], 4
      %s51 = int_to_ptr.vmem [resolvable:$true] %s50
      %56 = dma.hbm_to_vmem [thread:$0]  %s3, 256, %s51, [#allocation6], 64, 64, 4
    $region17: #{tpu_custom_call.1} parent=1 // pred_fallthru
      _
    // Predicated region
    $region18: #{tpu_custom_call.1} parent=1 // pred_check
      _
    $region19: #{tpu_custom_call.1} parent=1 // pred_check_branch
      %58 = sbr.rel (0) target = $region21
    $region20: #{tpu_custom_call.1} parent=1 // pred_region
      _
    $region21: #{tpu_custom_call.1} parent=1 // pred_fallthru
      _
    // Predicated region
    $region22: #{tpu_custom_call.1} parent=1 // pred_check
      _
    $region23: #{tpu_custom_call.1} parent=1 // pred_check_branch
      %60 = sbr.rel (0) target = $region25
    $region24: #{tpu_custom_call.1} parent=1 // pred_region
      _
    $region25: #{tpu_custom_call.1} parent=1 // pred_fallthru
      _
    // Predicated region
    $region26: #{tpu_custom_call.1} parent=1 // pred_check
      _
    $region27: #{tpu_custom_call.1} parent=1 // pred_check_branch
      %62 = sbr.rel (0) target = $region29
    $region28: #{tpu_custom_call.1} parent=1 // pred_region
      _
    $region29: #{tpu_custom_call.1} parent=1 // pred_fallthru
      _
    // Predicated region
    $region30: #{tpu_custom_call.1} parent=1 // pred_check
      _
    $region31: #{tpu_custom_call.1} parent=1 // pred_check_branch
      %64 = sbr.rel (0) target = $region33
    $region32: #{tpu_custom_call.1} parent=1 // pred_region
      %65 = dma.done [#allocation3], 128
    $region33: #{tpu_custom_call.1} parent=1 // pred_fallthru
      _
    // Predicated region
    $region34: #{tpu_custom_call.1} parent=1 // pred_check
      _
    $region35: #{tpu_custom_call.1} parent=1 // pred_check_branch
      %67 = sbr.rel (0) target = $region37
    $region36: #{tpu_custom_call.1} parent=1 // pred_region
      %68 = dma.done [#allocation6], 256
    $region37: #{tpu_custom_call.1} parent=1 // pred_fallthru
      _
    // Predicated region
    $region38: #{tpu_custom_call.1} parent=1 // pred_check
      _
    $region39: #{tpu_custom_call.1} parent=1 // pred_check_branch
      %70 = sbr.rel (0) target = $region41
    $region40: #{tpu_custom_call.1} parent=1 // pred_region
      %71 = dma.done [#allocation6], 256
    $region41: #{tpu_custom_call.1} parent=1 // pred_fallthru
      _
    %v73 = vld [vmem:[#allocation2] sm:$0xf]
    %v74 = vld [vmem:[#allocation2 + $0x4] sm:$0xf]
    %v75 = vld [vmem:[#allocation5] sm:$0xf]
    %v76 = vld [vmem:[#allocation5 + $0x4] sm:$0xf]
    %v77 = vld [vmem:[#allocation5 + $0x8] sm:$0xf]
    %v78 = vld [vmem:[#allocation5 + $0xc] sm:$0xf]
    %v79 = vld [vmem:[%s2] sm:$0x1]
    %v81 = vlaneseq
    %v82 = vshrl.u32 %v81, 7
    %v83 = vsub.s32 0, %v82
    %v84 = vrot.slane %v79, %v83
    %v88 = vunpack.c.l.b16 %v73
    %v89 = vunpack.c.l.b16 %v74
    %v90 = vpack.c.b16 %v89, %v88
    %v95 = vunpack.c.l.b16 %v75
    %v96 = vunpack.c.l.b16 %v76
    %v97 = vunpack.c.l.b16 %v77
    %v98 = vunpack.c.l.b16 %v78
    %v99 = vpack.c.b16 %v96, %v95
    %v100 = vpack.c.b16 %v98, %v97
    %vm103 = vcmask 261120
    %v105 = vsel %vm103, %v90, 0
    %107 = vmatprep.subr.bf16.mxu0 0
    %108 = vmatpush1.bf16.msra.mxu0 %v99
    %109 = vmatprep.subr.bf16.mxu0 0
    %110 = vmatpush1.bf16.msra.mxu0 %v100
    %111 = vmatprep.subr.bf16.mxu0 0
    %112 = vmatpush1.bf16.msra.mxu0 0
    %113 = vmatprep.subr.bf16.mxu0 0
    %114 = vmatpush1.bf16.msra.mxu0 0
    %115 = vmatprep.subr.bf16.mxu0 0
    %116 = vmatpush1.bf16.msra.mxu0 0
    %117 = vmatprep.subr.bf16.mxu0 0
    %118 = vmatpush1.bf16.msra.mxu0 0
    %119 = vmatprep.subr.bf16.mxu0 0
    %120 = vmatpush1.bf16.msra.mxu0 0
    %121 = vmatprep.subr.bf16.mxu0 0
    %122 = vmatpush1.bf16.msra.mxu0 0
    %123 = vmatprep.subr.bf16.mxu0 0
    %124 = vmatpush1.bf16.msra.mxu0 0
    %125 = vmatprep.subr.bf16.mxu0 0
    %126 = vmatpush1.bf16.msra.mxu0 0
    %127 = vmatprep.subr.bf16.mxu0 0
    %128 = vmatpush1.bf16.msra.mxu0 0
    %129 = vmatprep.subr.bf16.mxu0 0
    %130 = vmatpush1.bf16.msra.mxu0 0
    %131 = vmatprep.subr.bf16.mxu0 0
    %132 = vmatpush1.bf16.msra.mxu0 0
    %133 = vmatprep.subr.bf16.mxu0 0
    %134 = vmatpush1.bf16.msra.mxu0 0
    %135 = vmatprep.subr.bf16.mxu0 0
    %136 = vmatpush1.bf16.msra.mxu0 0
    %137 = vmatprep.subr.bf16.mxu0 0
    %138 = vmatpush1.bf16.msra.mxu0 0
    %139 = vmatprep.mubr.bf16.mxu0 0
    %140 = vmatmul.mubr.bf16.gmra.mrb[0].mxu0 %v105
    %v141 = vpop.f32.mrb[0].mxu0
    %v142 = vadd.f32 %v84, %v141
    %v143 = vpop.f32.mrb[0].mxu0
    %v144 = vpop.f32.mrb[0].mxu0
    %v145 = vadd.f32 %v84, %v144
    %v146 = vpop.f32.mrb[0].mxu0
    %147 = vdwg.mxu0
    %v148 = vmul.f32 %v142, 0.35355338
    %v149 = vmul.f32 %v145, 0.35355338
    %v150 = vpack.c.bf16 %v149, %v148
    %v152 = vunpack.c.l.b16 %v150
    %v153 = vunpack.c.h.b16 %v150
    %v154 = vpack.c.b16 %v152, %v152
    %v155 = vpack.c.b16 %v153, %v153
    %vm158 = vcmask 257024
    %159 = vst.msk [vmem:[#allocation8] sm:$0xf] %vm158, %v154
    %160 = vst.msk [vmem:[#allocation8 + $0x4] sm:$0xf] %vm158, %v155
    %v161 = vld [vmem:[#allocation7] sm:$0xf]
    %v162 = vld [vmem:[#allocation7 + $0x4] sm:$0xf]
    %v163 = vld [vmem:[#allocation7 + $0x8] sm:$0xf]
    %v164 = vld [vmem:[#allocation7 + $0xc] sm:$0xf]
    %v165 = vld [vmem:[%s4] sm:$0x1]
    %v167 = vlaneseq
    %v168 = vshrl.u32 %v167, 7
    %v169 = vsub.s32 0, %v168
    %v170 = vrot.slane %v165, %v169
    %v176 = vunpack.c.l.b16 %v161
    %v177 = vunpack.c.l.b16 %v162
    %v178 = vunpack.c.l.b16 %v163
    %v179 = vunpack.c.l.b16 %v164
    %v180 = vpack.c.b16 %v177, %v176
    %v181 = vpack.c.b16 %v179, %v178
    %184 = vmatprep.subr.bf16.mxu0 0
    %185 = vmatpush1.bf16.msra.mxu0 %v180
    %186 = vmatprep.subr.bf16.mxu0 0
    %187 = vmatpush1.bf16.msra.mxu0 %v181
    %188 = vmatprep.subr.bf16.mxu0 0
    %189 = vmatpush1.bf16.msra.mxu0 0
    %190 = vmatprep.subr.bf16.mxu0 0
    %191 = vmatpush1.bf16.msra.mxu0 0
    %192 = vmatprep.subr.bf16.mxu0 0
    %193 = vmatpush1.bf16.msra.mxu0 0
    %194 = vmatprep.subr.bf16.mxu0 0
    %195 = vmatpush1.bf16.msra.mxu0 0
    %196 = vmatprep.subr.bf16.mxu0 0
    %197 = vmatpush1.bf16.msra.mxu0 0
    %198 = vmatprep.subr.bf16.mxu0 0
    %199 = vmatpush1.bf16.msra.mxu0 0
    %200 = vmatprep.subr.bf16.mxu0 0
    %201 = vmatpush1.bf16.msra.mxu0 0
    %202 = vmatprep.subr.bf16.mxu0 0
    %203 = vmatpush1.bf16.msra.mxu0 0
    %204 = vmatprep.subr.bf16.mxu0 0
    %205 = vmatpush1.bf16.msra.mxu0 0
    %206 = vmatprep.subr.bf16.mxu0 0
    %207 = vmatpush1.bf16.msra.mxu0 0
    %208 = vmatprep.subr.bf16.mxu0 0
    %209 = vmatpush1.bf16.msra.mxu0 0
    %210 = vmatprep.subr.bf16.mxu0 0
    %211 = vmatpush1.bf16.msra.mxu0 0
    %212 = vmatprep.subr.bf16.mxu0 0
    %213 = vmatpush1.bf16.msra.mxu0 0
    %214 = vmatprep.subr.bf16.mxu0 0
    %215 = vmatpush1.bf16.msra.mxu0 0
    %216 = vmatprep.mubr.bf16.mxu0 0
    %217 = vmatmul.mubr.bf16.gmra.mrb[0].mxu0 %v105
    %v218 = vpop.f32.mrb[0].mxu0
    %v219 = vadd.f32 %v170, %v218
    %v220 = vpop.f32.mrb[0].mxu0
    %v221 = vpop.f32.mrb[0].mxu0
    %v222 = vadd.f32 %v170, %v221
    %v223 = vpop.f32.mrb[0].mxu0
    %224 = vdwg.mxu0
    %v225 = vpack.c.bf16 %v222, %v219
    %v227 = vunpack.c.l.b16 %v225
    %v228 = vunpack.c.h.b16 %v225
    %v229 = vpack.c.b16 %v227, %v227
    %v230 = vpack.c.b16 %v228, %v228
    %233 = vst.msk [vmem:[#allocation9] sm:$0xf] %vm158, %v229
    %234 = vst.msk [vmem:[#allocation9 + $0x4] sm:$0xf] %vm158, %v230
    %v235 = vld [vmem:[%s5] sm:$0xf]
    %v236 = vld [vmem:[%s5 + $0x4] sm:$0xf]
    %v237 = vld [vmem:[%s5 + $0x8] sm:$0xf]
    %v238 = vld [vmem:[%s5 + $0xc] sm:$0xf]
    %v239 = vld [vmem:[%s6] sm:$0x1]
    %v241 = vlaneseq
    %v242 = vshrl.u32 %v241, 7
    %v243 = vsub.s32 0, %v242
    %v244 = vrot.slane %v239, %v243
    %v250 = vunpack.c.l.b16 %v235
    %v251 = vunpack.c.l.b16 %v236
    %v252 = vunpack.c.l.b16 %v237
    %v253 = vunpack.c.l.b16 %v238
    %v254 = vpack.c.b16 %v251, %v250
    %v255 = vpack.c.b16 %v253, %v252
    %258 = vmatprep.subr.bf16.mxu0 0
    %259 = vmatpush1.bf16.msra.mxu0 %v254
    %260 = vmatprep.subr.bf16.mxu0 0
    %261 = vmatpush1.bf16.msra.mxu0 %v255
    %262 = vmatprep.subr.bf16.mxu0 0
    %263 = vmatpush1.bf16.msra.mxu0 0
    %264 = vmatprep.subr.bf16.mxu0 0
    %265 = vmatpush1.bf16.msra.mxu0 0
    %266 = vmatprep.subr.bf16.mxu0 0
    %267 = vmatpush1.bf16.msra.mxu0 0
    %268 = vmatprep.subr.bf16.mxu0 0
    %269 = vmatpush1.bf16.msra.mxu0 0
    %270 = vmatprep.subr.bf16.mxu0 0
    %271 = vmatpush1.bf16.msra.mxu0 0
    %272 = vmatprep.subr.bf16.mxu0 0
    %273 = vmatpush1.bf16.msra.mxu0 0
    %274 = vmatprep.subr.bf16.mxu0 0
    %275 = vmatpush1.bf16.msra.mxu0 0
    %276 = vmatprep.subr.bf16.mxu0 0
    %277 = vmatpush1.bf16.msra.mxu0 0
    %278 = vmatprep.subr.bf16.mxu0 0
    %279 = vmatpush1.bf16.msra.mxu0 0
    %280 = vmatprep.subr.bf16.mxu0 0
    %281 = vmatpush1.bf16.msra.mxu0 0
    %282 = vmatprep.subr.bf16.mxu0 0
    %283 = vmatpush1.bf16.msra.mxu0 0
    %284 = vmatprep.subr.bf16.mxu0 0
    %285 = vmatpush1.bf16.msra.mxu0 0
    %286 = vmatprep.subr.bf16.mxu0 0
    %287 = vmatpush1.bf16.msra.mxu0 0
    %288 = vmatprep.subr.bf16.mxu0 0
    %289 = vmatpush1.bf16.msra.mxu0 0
    %290 = vmatprep.mubr.bf16.mxu0 0
    %291 = vmatmul.mubr.bf16.gmra.mrb[0].mxu0 %v105
    %v292 = vpop.f32.mrb[0].mxu0
    %v293 = vadd.f32 %v244, %v292
    %v294 = vpop.f32.mrb[0].mxu0
    %v295 = vpop.f32.mrb[0].mxu0
    %v296 = vadd.f32 %v244, %v295
    %v297 = vpop.f32.mrb[0].mxu0
    %298 = vdwg.mxu0
    %v299 = vpack.c.bf16 %v296, %v293
    %v301 = vunpack.c.l.b16 %v299
    %v302 = vunpack.c.h.b16 %v299
    %v303 = vpack.c.b16 %v301, %v301
    %v304 = vpack.c.b16 %v302, %v302
    %307 = vst.msk [vmem:[#allocation11] sm:$0xf] %vm158, %v303
    %308 = vst.msk [vmem:[#allocation11 + $0x4] sm:$0xf] %vm158, %v304
    // Predicated region
    $region42: #{tpu_custom_call.1} parent=1 // pred_check
      _
    $region43: #{tpu_custom_call.1} parent=1 // pred_check_branch
      %310 = sbr.rel (0) target = $region45
    $region44: #{tpu_custom_call.1} parent=1 // pred_region
      %s312 = ssub.s32 128, 128
      %313 = vsyncadd [#allocation4], %s312
      %s314 = sshll.u32 [#allocation8], 4
      %s315 = int_to_ptr.vmem [resolvable:$true] %s314
      %320 = dma.vmem_to_hbm [thread:$0]  %s315, 128, %s7, [#allocation4], 64, 64, 4
    $region45: #{tpu_custom_call.1} parent=1 // pred_fallthru
      _
    // Predicated region
    $region46: #{tpu_custom_call.1} parent=1 // pred_check
      _
    $region47: #{tpu_custom_call.1} parent=1 // pred_check_branch
      %322 = sbr.rel (0) target = $region49
    $region48: #{tpu_custom_call.1} parent=1 // pred_region
      %s324 = ssub.s32 128, 128
      %325 = vsyncadd [#allocation10], %s324
      %s326 = sshll.u32 [#allocation9], 4
      %s327 = int_to_ptr.vmem [resolvable:$true] %s326
      %332 = dma.vmem_to_hbm [thread:$0]  %s327, 128, %s8, [#allocation10], 64, 64, 4
    $region49: #{tpu_custom_call.1} parent=1 // pred_fallthru
      _
    // Predicated region
    $region50: #{tpu_custom_call.1} parent=1 // pred_check
      _
    $region51: #{tpu_custom_call.1} parent=1 // pred_check_branch
      %334 = sbr.rel (0) target = $region53
    $region52: #{tpu_custom_call.1} parent=1 // pred_region
      %s336 = ssub.s32 128, 128
      %337 = vsyncadd [#allocation10], %s336
      %s338 = sshll.u32 [#allocation11], 4
      %s339 = int_to_ptr.vmem [resolvable:$true] %s338
      %344 = dma.vmem_to_hbm [thread:$0]  %s339, 128, %s9, [#allocation10], 64, 64, 4
    $region53: #{tpu_custom_call.1} parent=1 // pred_fallthru
      _
    // Predicated region
    $region54: #{tpu_custom_call.1} parent=1 // pred_check
      _
    $region55: #{tpu_custom_call.1} parent=1 // pred_check_branch
      %346 = sbr.rel (0) target = $region57
    $region56: #{tpu_custom_call.1} parent=1 // pred_region
      %347 = dma.done [#allocation4], 128
    $region57: #{tpu_custom_call.1} parent=1 // pred_fallthru
      _
    // Predicated region
    $region58: #{tpu_custom_call.1} parent=1 // pred_check
      _
    $region59: #{tpu_custom_call.1} parent=1 // pred_check_branch
      %349 = sbr.rel (0) target = $region61
    $region60: #{tpu_custom_call.1} parent=1 // pred_region
      %350 = dma.done [#allocation10], 128
    $region61: #{tpu_custom_call.1} parent=1 // pred_fallthru
      _
    // Predicated region
    $region62: #{tpu_custom_call.1} parent=1 // pred_check
      _
    $region63: #{tpu_custom_call.1} parent=1 // pred_check_branch
      %352 = sbr.rel (0) target = $region65
    $region64: #{tpu_custom_call.1} parent=1 // pred_region
      %353 = dma.done [#allocation10], 128
    $region65: #{tpu_custom_call.1} parent=1 // pred_fallthru
      _
    %354 = vsyncpa [#allocation3], 1
    %355 = vsyncpa [#allocation6], 1
    %356 = vsyncpa [#allocation4], 1
    %357 = vsyncpa [#allocation10], 1

</llo_original>
